<compile_context>
chip_gen: v5e
topology: v5e:2x2
jax: 0.10.0
libtpu: 0.0.40
codegen_flags: <defaults>
</compile_context>

<pallas_src>
import functools

import jax
import jax.numpy as jnp
from jax.experimental import pallas as pl
from jax.experimental.pallas import tpu as pltpu


def _round_up(n, m):
    return ((n + m - 1) // m) * m


def _num_tensorcores():
    """Rough per-chip TensorCore count (2 on v7x / megacore chips, else 1)."""
    try:
        kind = jax.devices()[0].device_kind.lower()
    except Exception:
        return 1
    for tag in ("v7", "v4", "v5p"):
        if tag in kind:
            return 2
    return 1


def critic_kernel(x_ref, w1_ref, b1_ref, w2_ref, b2_ref, w3_ref, b3_ref, q_ref):
    # x tile in its input dtype; cast to the (possibly bf16) MXU feed dtype here.
    x = x_ref[...].astype(w1_ref.dtype)                      # (tb, in)

    # fc1 + ReLU  (MXU matmul, f32 accumulation); re-materialize in w2's dtype
    # so the bf16 path halves the (tb, f1) intermediate before the second dot.
    h1 = jnp.dot(x, w1_ref[...], preferred_element_type=jnp.float32)
    h1 = jnp.maximum(h1 + b1_ref[...], 0.0).astype(w2_ref.dtype)   # (tb, f1)

    # fc2 + ReLU (bias/ReLU in f32)
    h2 = jnp.dot(h1, w2_ref[...], preferred_element_type=jnp.float32)
    h2 = jnp.maximum(h2 + b2_ref[...], 0.0)                  # (tb, f2) f32

    # fc3 (output width 1): VPU multiply + lane reduction instead of an N=1 MXU
    # matmul; w3 is a (1, f2) row, b3 is a scalar in SMEM.
    w3_row = w3_ref[...].astype(jnp.float32)                 # (1, f2)
    q = jnp.sum(h2 * w3_row, axis=-1, keepdims=True)         # (tb, 1) f32
    q = jnp.tanh(q + b3_ref[0])

    q_ref[...] = q.astype(q_ref.dtype)


def prepare_params(params, compute_dtype=jnp.bfloat16):
    """ONE-TIME pad + cast of the critic parameters (do this at init, reuse).

    Hidden feature dims (fc1, fc2) are zero-padded to lane multiples (identity:
    zero weights/bias + ReLU(0)=0 keep padded lanes inert through the w3
    reduce).  Weights are cast to `compute_dtype` (bf16 default) for the MXU;
    biases stay f32.  The input feature dim is left unpadded.
    """
    w1, b1, w2, b2, w3, b3 = params
    input_size, fc1 = w1.shape
    fc2 = w2.shape[1]
    f1_p = _round_up(fc1, 128)
    f2_p = _round_up(fc2, 128)
    cdt = compute_dtype

    w1p = jnp.zeros((input_size, f1_p), cdt).at[:, :fc1].set(w1.astype(cdt))
    b1p = jnp.zeros((1, f1_p), jnp.float32).at[:, :fc1].set(b1.astype(jnp.float32))
    w2p = jnp.zeros((f1_p, f2_p), cdt).at[:fc1, :fc2].set(w2.astype(cdt))
    b2p = jnp.zeros((1, f2_p), jnp.float32).at[:, :fc2].set(b2.astype(jnp.float32))
    w3p = jnp.zeros((1, f2_p), cdt).at[:, :fc2].set(w3.reshape(1, fc2).astype(cdt))
    b3s = b3.reshape((1,)).astype(jnp.float32)               # scalar bias -> SMEM
    return (w1p, b1p, w2p, b2p, w3p, b3s)


@functools.partial(jax.jit, static_argnames=("batch_tile",))
def critic_forward(x, prepared_params, batch_tile=None):
    """Fused forward pass of CriticNetwork.

    x: [B, input_size] (any float dtype; cast in-kernel).
    prepared_params: output of prepare_params (cast/padded ONCE at init).
    batch_tile: rows per grid step.  Default (None) = one balanced block per
    TensorCore (1 step on v5e/v6e, 2 parallel steps on v7x), capped at 4096.
    Returns [B, 1] float32.
    """
    w1, b1, w2, b2, w3, b3 = prepared_params
    B, input_size = x.shape
    f1_p = w1.shape[1]
    f2_p = w2.shape[1]

    if batch_tile is None:
        tb = pl.cdiv(B, _num_tensorcores())
    else:
        tb = batch_tile
    tb = _round_up(min(max(tb, 8), 4096), 8)
    grid = (pl.cdiv(B, tb),)

    # Honest (unpadded-x) scheduler hint.
    w_bytes = sum(a.size * a.dtype.itemsize for a in (w1, b1, w2, b2, w3, b3))
    cost = pl.CostEstimate(
        flops=2 * B * (input_size * f1_p + f1_p * f2_p + f2_p),
        transcendentals=B,
        bytes_accessed=B * input_size * x.dtype.itemsize + w_bytes + B * 4,
    )

    # Weights/biases are small -> full-tensor blocks with constant index maps
    # (never re-fetched across grid steps).
    full = lambda a: pl.BlockSpec(a.shape, lambda i: (0, 0))

    q = pl.pallas_call(
        critic_kernel,
        out_shape=jax.ShapeDtypeStruct((B, 1), jnp.float32),
        grid_spec=pltpu.PrefetchScalarGridSpec(
            num_scalar_prefetch=0,
            grid=grid,
            in_specs=[
                pl.BlockSpec((tb, input_size), lambda i: (i, 0)),    # x tile
                full(w1), full(b1),                                  # fc1
                full(w2), full(b2),                                  # fc2
                full(w3),                                            # fc3 row
                pl.BlockSpec(memory_space=pltpu.MemorySpace.SMEM),   # b3 scalar
            ],
            out_specs=pl.BlockSpec((tb, 1), lambda i: (i, 0)),
        ),
        compiler_params=pltpu.CompilerParams(
            dimension_semantics=("parallel",),
            vmem_limit_bytes=32 * 1024 * 1024,
        ),
        cost_estimate=cost,
    )(x, w1, b1, w2, b2, w3, b3)
    return q


def init_params(key, input_size, fc1, fc2):
    """Deterministic init mimicking torch.nn.Linear default
    (U[-1/sqrt(fan_in), 1/sqrt(fan_in)]).  Weights stored as [in, out]."""
    ks = jax.random.split(key, 6)

    def lin(kw, kb, fan_in, fan_out):
        bound = 1.0 / jnp.sqrt(fan_in)
        w = jax.random.uniform(kw, (fan_in, fan_out), jnp.float32, -bound, bound)
        b = jax.random.uniform(kb, (1, fan_out), jnp.float32, -bound, bound)
        return w, b

    w1, b1 = lin(ks[0], ks[1], input_size, fc1)
    w2, b2 = lin(ks[2], ks[3], fc1, fc2)
    w3, b3 = lin(ks[4], ks[5], fc2, 1)
    return (w1, b1, w2, b2, w3, b3)


def critic_forward_ref(x, params):
    w1, b1, w2, b2, w3, b3 = params
    h1 = jax.nn.relu(x @ w1 + b1)
    h2 = jax.nn.relu(h1 @ w2 + b2)
    return jnp.tanh(h2 @ w3 + b3)


if __name__ == "__main__":
    # Small shapes consistent with CriticNetwork(beta, input_size, fc1, fc2, ...)
    INPUT_SIZE, FC1, FC2 = 16, 32, 32

    key = jax.random.PRNGKey(0)
    kx, kx2, kp = jax.random.split(key, 3)
    params = init_params(kp, INPUT_SIZE, FC1, FC2)

    # Parameters are padded / cast ONCE here (the RL loop would reuse these).
    params_f32 = prepare_params(params, compute_dtype=jnp.float32)
    params_bf16 = prepare_params(params)                      # bf16 default

    # Main check: generation-aware grid (1 step single-TC, 2 steps v7x), f32.
    B = 512
    x = jax.random.normal(kx, (B, INPUT_SIZE), jnp.float32)
    q = jax.block_until_ready(critic_forward(x, params_f32))
    q_ref = critic_forward_ref(x, params)
    assert q.shape == (B, 1)
    assert jnp.allclose(q, q_ref, atol=1e-5, rtol=1e-5), "f32 mismatch vs reference"

    # Default bf16 weight / MXU-feed path (f32 accumulation kept).
    q_bf16 = jax.block_until_ready(critic_forward(x, params_bf16))
    assert jnp.allclose(q_bf16, q_ref, atol=3e-2, rtol=3e-2), "bf16 mismatch vs reference"

    # Ragged small batch with an explicit 2-step grid exercises the
    # partial-last-block path (no batch padding copy in HBM).
    xs = jax.random.normal(kx2, (20, INPUT_SIZE), jnp.float32)
    qs = jax.block_until_ready(critic_forward(xs, params_f32, batch_tile=16))
    qs_ref = critic_forward_ref(xs, params)
    assert qs.shape == (20, 1)
    assert jnp.allclose(qs, qs_ref, atol=1e-5, rtol=1e-5), "ragged-batch mismatch"

    print("KERNEL_OK")
</pallas_src>

<mosaic_0001>
module attributes {stable_mosaic.version = 11 : i64} {
  func.func @critic_kernel(%arg0: i32, %arg1: memref<512x16xf32, #tpu.memory_space<vmem>>, %arg2: memref<16x128xf32, #tpu.memory_space<vmem>>, %arg3: memref<1x128xf32, #tpu.memory_space<vmem>>, %arg4: memref<128x128xf32, #tpu.memory_space<vmem>>, %arg5: memref<1x128xf32, #tpu.memory_space<vmem>>, %arg6: memref<1x128xf32, #tpu.memory_space<vmem>>, %arg7: memref<1xf32, #tpu.memory_space<smem>>, %arg8: memref<512x1xf32, #tpu.memory_space<vmem>>) attributes {dimension_semantics = [#tpu.dimension_semantics<parallel>], iteration_bounds = array<i64: 1>, scalar_prefetch = 0 : i64, scratch_operands = 0 : i64, tpu.core_type = #tpu.core_type<tc>, window_params = [{transform_indices = @transform_0, window_bounds = array<i64: 512, 16>}, {pipeline_mode = #tpu.pipeline_mode<synchronous>, transform_indices = @transform_1, window_bounds = array<i64: 16, 128>}, {pipeline_mode = #tpu.pipeline_mode<synchronous>, transform_indices = @transform_2, window_bounds = array<i64: 1, 128>}, {pipeline_mode = #tpu.pipeline_mode<synchronous>, transform_indices = @transform_3, window_bounds = array<i64: 128, 128>}, {pipeline_mode = #tpu.pipeline_mode<synchronous>, transform_indices = @transform_4, window_bounds = array<i64: 1, 128>}, {pipeline_mode = #tpu.pipeline_mode<synchronous>, transform_indices = @transform_5, window_bounds = array<i64: 1, 128>}, {transform_indices = @transform_6, window_bounds = array<i64: 1>}, {transform_indices = @transform_7, window_bounds = array<i64: 512, 1>}]} {
    %c0 = arith.constant 0 : index
    %c0_0 = arith.constant 0 : index
    %0 = vector.load %arg1[%c0, %c0_0] : memref<512x16xf32, #tpu.memory_space<vmem>>, vector<512x16xf32>
    %c0_1 = arith.constant 0 : index
    %c0_2 = arith.constant 0 : index
    %1 = vector.load %arg2[%c0_1, %c0_2] : memref<16x128xf32, #tpu.memory_space<vmem>>, vector<16x128xf32>
    %cst = arith.constant dense<0.000000e+00> : vector<512x128xf32>
    %2 = tpu.matmul %0, %1, %cst {dimension_numbers = #tpu.dot_dimension_numbers<[1], [0], [0], [1], [0, 0, 1, 1], [], []>} : vector<512x16xf32>, vector<16x128xf32>, vector<512x128xf32> -> vector<512x128xf32>
    %c0_3 = arith.constant 0 : index
    %c0_4 = arith.constant 0 : index
    %3 = vector.load %arg3[%c0_3, %c0_4] : memref<1x128xf32, #tpu.memory_space<vmem>>, vector<1x128xf32>
    %4 = vector.broadcast %3 : vector<1x128xf32> to vector<512x128xf32>
    %5 = arith.addf %2, %4 : vector<512x128xf32>
    %cst_5 = arith.constant 0.000000e+00 : f32
    %6 = vector.broadcast %cst_5 : f32 to vector<512x128xf32>
    %7 = arith.maximumf %5, %6 : vector<512x128xf32>
    %c0_6 = arith.constant 0 : index
    %c0_7 = arith.constant 0 : index
    %8 = vector.load %arg4[%c0_6, %c0_7] : memref<128x128xf32, #tpu.memory_space<vmem>>, vector<128x128xf32>
    %cst_8 = arith.constant dense<0.000000e+00> : vector<512x128xf32>
    %9 = tpu.matmul %7, %8, %cst_8 {dimension_numbers = #tpu.dot_dimension_numbers<[1], [0], [0], [1], [0, 0, 1, 1], [], []>} : vector<512x128xf32>, vector<128x128xf32>, vector<512x128xf32> -> vector<512x128xf32>
    %c0_9 = arith.constant 0 : index
    %c0_10 = arith.constant 0 : index
    %10 = vector.load %arg5[%c0_9, %c0_10] : memref<1x128xf32, #tpu.memory_space<vmem>>, vector<1x128xf32>
    %11 = vector.broadcast %10 : vector<1x128xf32> to vector<512x128xf32>
    %12 = arith.addf %9, %11 : vector<512x128xf32>
    %cst_11 = arith.constant 0.000000e+00 : f32
    %13 = vector.broadcast %cst_11 : f32 to vector<512x128xf32>
    %14 = arith.maximumf %12, %13 : vector<512x128xf32>
    %c0_12 = arith.constant 0 : index
    %c0_13 = arith.constant 0 : index
    %15 = vector.load %arg6[%c0_12, %c0_13] : memref<1x128xf32, #tpu.memory_space<vmem>>, vector<1x128xf32>
    %16 = vector.broadcast %15 : vector<1x128xf32> to vector<512x128xf32>
    %17 = arith.mulf %14, %16 : vector<512x128xf32>
    %cst_14 = arith.constant dense<0.000000e+00> : vector<512xf32>
    %18 = vector.multi_reduction <add>, %17, %cst_14 [1] : vector<512x128xf32> to vector<512xf32>
    %19 = vector.shape_cast %18 : vector<512xf32> to vector<512x1xf32>
    %c0_15 = arith.constant 0 : index
    %20 = memref.load %arg7[%c0_15] : memref<1xf32, #tpu.memory_space<smem>>
    %21 = vector.broadcast %20 : f32 to vector<512x1xf32>
    %22 = arith.addf %19, %21 : vector<512x1xf32>
    %23 = math.tanh %22 : vector<512x1xf32>
    %c0_16 = arith.constant 0 : index
    %c0_17 = arith.constant 0 : index
    %24 = vector.load %arg8[%c0_16, %c0_17] : memref<512x1xf32, #tpu.memory_space<vmem>>, vector<512x1xf32>
    tpu.vector_store %arg8[%c0_16, %c0_17], %23 {strides = array<i32>} : memref<512x1xf32, #tpu.memory_space<vmem>>, vector<512x1xf32>,
    return
  }
  func.func @transform_0(%arg0: i32) -> (i32, i32) {
    %c0_i32 = arith.constant 0 : i32
    %c0_i32_0 = arith.constant 0 : i32
    return %arg0, %c0_i32 : i32, i32
  }
  func.func @transform_1(%arg0: i32) -> (i32, i32) {
    %c0_i32 = arith.constant 0 : i32
    %c0_i32_0 = arith.constant 0 : i32
    %c0_i32_1 = arith.constant 0 : i32
    return %c0_i32, %c0_i32_0 : i32, i32
  }
  func.func @transform_2(%arg0: i32) -> (i32, i32) {
    %c0_i32 = arith.constant 0 : i32
    %c0_i32_0 = arith.constant 0 : i32
    %c0_i32_1 = arith.constant 0 : i32
    return %c0_i32, %c0_i32_0 : i32, i32
  }
  func.func @transform_3(%arg0: i32) -> (i32, i32) {
    %c0_i32 = arith.constant 0 : i32
    %c0_i32_0 = arith.constant 0 : i32
    %c0_i32_1 = arith.constant 0 : i32
    return %c0_i32, %c0_i32_0 : i32, i32
  }
  func.func @transform_4(%arg0: i32) -> (i32, i32) {
    %c0_i32 = arith.constant 0 : i32
    %c0_i32_0 = arith.constant 0 : i32
    %c0_i32_1 = arith.constant 0 : i32
    return %c0_i32, %c0_i32_0 : i32, i32
  }
  func.func @transform_5(%arg0: i32) -> (i32, i32) {
    %c0_i32 = arith.constant 0 : i32
    %c0_i32_0 = arith.constant 0 : i32
    %c0_i32_1 = arith.constant 0 : i32
    return %c0_i32, %c0_i32_0 : i32, i32
  }
  func.func @transform_6(%arg0: i32) -> i32 {
    %c0_i32 = arith.constant 0 : i32
    %c0_i32_0 = arith.constant 0 : i32
    return %c0_i32 : i32
  }
  func.func @transform_7(%arg0: i32) -> (i32, i32) {
    %c0_i32 = arith.constant 0 : i32
    %c0_i32_0 = arith.constant 0 : i32
    return %arg0, %c0_i32 : i32, i32
  }
}

</mosaic_0001>

<llo_original>
// kernel: critic_forward.1
$region0: #{critic_forward.1}
  #allocation0 [shape = 'u32[]', space=smem, size = 0x4, offset = 0x4, fixed_abs, tag = 'smem constant byte address 0x4 - core index']
  #allocation1 [shape = 'u32[72,128]{1,0:T(1,128)}', space=vmem, size = 0x9000, scoped, tag = 'internal scratch']
  #allocation2 [shape = 'f32[1]{0:T(128)S(6)}', space=smem, size = 0x200, scoped, tag = 'scoped memory for critic_forward.1']
  %s0 = inlined_call_operand.vmem [shape: f32[512,16], index: 0, kind: input, shape index: {}]
  %s1 = inlined_call_operand.vmem [shape: f32[16,128], index: 1, kind: input, shape index: {}]
  %s2 = inlined_call_operand.vmem [shape: f32[1,128], index: 2, kind: input, shape index: {}]
  %s3 = inlined_call_operand.vmem [shape: f32[128,128], index: 3, kind: input, shape index: {}]
  %s4 = inlined_call_operand.vmem [shape: f32[1,128], index: 4, kind: input, shape index: {}]
  %s5 = inlined_call_operand.vmem [shape: f32[1,128], index: 5, kind: input, shape index: {}]
  %s6 = inlined_call_operand.<no memory space> [shape: f32[1], index: 6, kind: input, shape index: {}]
  %s7 = inlined_call_operand.vmem [shape: f32[512,1], index: 7, kind: output, shape index: {}]
  %s8 = sld [smem:[#allocation0]]
  $region38: #{critic_forward.1} parent=0
    _
  %s10 = ssub.s32 1, %s8
  %s11 = scalar_select 0, %s10, %s8
  %12 = sst [smem:[#allocation2]] %s6
  // Predicated region
  $region2: #{critic_forward.1} parent=0 // pred_check
    _
  $region3: #{critic_forward.1} parent=0 // pred_check_branch
    %14 = sbr.rel (0) target = $region5
  $region4: #{critic_forward.1} parent=0 // pred_region
    _
  $region5: #{critic_forward.1} parent=0 // pred_fallthru
    _
  // Predicated region
  $region6: #{critic_forward.1} parent=0 // pred_check
    _
  $region7: #{critic_forward.1} parent=0 // pred_check_branch
    %16 = sbr.rel (0) target = $region9
  $region8: #{critic_forward.1} parent=0 // pred_region
    _
  $region9: #{critic_forward.1} parent=0 // pred_fallthru
    _
  // Predicated region
  $region10: #{critic_forward.1} parent=0 // pred_check
    _
  $region11: #{critic_forward.1} parent=0 // pred_check_branch
    %18 = sbr.rel (0) target = $region13
  $region12: #{critic_forward.1} parent=0 // pred_region
    _
  $region13: #{critic_forward.1} parent=0 // pred_fallthru
    _
  // Predicated region
  $region14: #{critic_forward.1} parent=0 // pred_check
    _
  $region15: #{critic_forward.1} parent=0 // pred_check_branch
    %20 = sbr.rel (0) target = $region17
  $region16: #{critic_forward.1} parent=0 // pred_region
    _
  $region17: #{critic_forward.1} parent=0 // pred_fallthru
    _
  // Predicated region
  $region18: #{critic_forward.1} parent=0 // pred_check
    _
  $region19: #{critic_forward.1} parent=0 // pred_check_branch
    %22 = sbr.rel (0) target = $region21
  $region20: #{critic_forward.1} parent=0 // pred_region
    _
  $region21: #{critic_forward.1} parent=0 // pred_fallthru
    _
  // Predicated region
  $region22: #{critic_forward.1} parent=0 // pred_check
    _
  $region23: #{critic_forward.1} parent=0 // pred_check_branch
    %24 = sbr.rel (0) target = $region25
  $region24: #{critic_forward.1} parent=0 // pred_region
    _
  $region25: #{critic_forward.1} parent=0 // pred_fallthru
    _
  // Predicated region
  $region26: #{critic_forward.1} parent=0 // pred_check
    _
  $region27: #{critic_forward.1} parent=0 // pred_check_branch
    %26 = sbr.rel (0) target = $region29
  $region28: #{critic_forward.1} parent=0 // pred_region
    _
  $region29: #{critic_forward.1} parent=0 // pred_fallthru
    _
  %v27 = vld [vmem:[%s0] sm:$0xff]
  %v28 = vld [vmem:[%s0 + $0x8] sm:$0xff]
  %v29 = vld [vmem:[%s0 + $0x10] sm:$0xff]
  %v30 = vld [vmem:[%s0 + $0x18] sm:$0xff]
  %v31 = vld [vmem:[%s0 + $0x20] sm:$0xff]
  %v32 = vld [vmem:[%s0 + $0x28] sm:$0xff]
  %v33 = vld [vmem:[%s0 + $0x30] sm:$0xff]
  %v34 = vld [vmem:[%s0 + $0x38] sm:$0xff]
  %v35 = vld [vmem:[%s0 + $0x40] sm:$0xff]
  %v36 = vld [vmem:[%s0 + $0x48] sm:$0xff]
  %v37 = vld [vmem:[%s0 + $0x50] sm:$0xff]
  %v38 = vld [vmem:[%s0 + $0x58] sm:$0xff]
  %v39 = vld [vmem:[%s0 + $0x60] sm:$0xff]
  %v40 = vld [vmem:[%s0 + $0x68] sm:$0xff]
  %v41 = vld [vmem:[%s0 + $0x70] sm:$0xff]
  %v42 = vld [vmem:[%s0 + $0x78] sm:$0xff]
  %v43 = vld [vmem:[%s0 + $0x80] sm:$0xff]
  %v44 = vld [vmem:[%s0 + $0x88] sm:$0xff]
  %v45 = vld [vmem:[%s0 + $0x90] sm:$0xff]
  %v46 = vld [vmem:[%s0 + $0x98] sm:$0xff]
  %v47 = vld [vmem:[%s0 + $0xa0] sm:$0xff]
  %v48 = vld [vmem:[%s0 + $0xa8] sm:$0xff]
  %v49 = vld [vmem:[%s0 + $0xb0] sm:$0xff]
  %v50 = vld [vmem:[%s0 + $0xb8] sm:$0xff]
  %v51 = vld [vmem:[%s0 + $0xc0] sm:$0xff]
  %v52 = vld [vmem:[%s0 + $0xc8] sm:$0xff]
  %v53 = vld [vmem:[%s0 + $0xd0] sm:$0xff]
  %v54 = vld [vmem:[%s0 + $0xd8] sm:$0xff]
  %v55 = vld [vmem:[%s0 + $0xe0] sm:$0xff]
  %v56 = vld [vmem:[%s0 + $0xe8] sm:$0xff]
  %v57 = vld [vmem:[%s0 + $0xf0] sm:$0xff]
  %v58 = vld [vmem:[%s0 + $0xf8] sm:$0xff]
  %v59 = vld [vmem:[%s0 + $0x100] sm:$0xff]
  %v60 = vld [vmem:[%s0 + $0x108] sm:$0xff]
  %v61 = vld [vmem:[%s0 + $0x110] sm:$0xff]
  %v62 = vld [vmem:[%s0 + $0x118] sm:$0xff]
  %v63 = vld [vmem:[%s0 + $0x120] sm:$0xff]
  %v64 = vld [vmem:[%s0 + $0x128] sm:$0xff]
  %v65 = vld [vmem:[%s0 + $0x130] sm:$0xff]
  %v66 = vld [vmem:[%s0 + $0x138] sm:$0xff]
  %v67 = vld [vmem:[%s0 + $0x140] sm:$0xff]
  %v68 = vld [vmem:[%s0 + $0x148] sm:$0xff]
  %v69 = vld [vmem:[%s0 + $0x150] sm:$0xff]
  %v70 = vld [vmem:[%s0 + $0x158] sm:$0xff]
  %v71 = vld [vmem:[%s0 + $0x160] sm:$0xff]
  %v72 = vld [vmem:[%s0 + $0x168] sm:$0xff]
  %v73 = vld [vmem:[%s0 + $0x170] sm:$0xff]
  %v74 = vld [vmem:[%s0 + $0x178] sm:$0xff]
  %v75 = vld [vmem:[%s0 + $0x180] sm:$0xff]
  %v76 = vld [vmem:[%s0 + $0x188] sm:$0xff]
  %v77 = vld [vmem:[%s0 + $0x190] sm:$0xff]
  %v78 = vld [vmem:[%s0 + $0x198] sm:$0xff]
  %v79 = vld [vmem:[%s0 + $0x1a0] sm:$0xff]
  %v80 = vld [vmem:[%s0 + $0x1a8] sm:$0xff]
  %v81 = vld [vmem:[%s0 + $0x1b0] sm:$0xff]
  %v82 = vld [vmem:[%s0 + $0x1b8] sm:$0xff]
  %v83 = vld [vmem:[%s0 + $0x1c0] sm:$0xff]
  %v84 = vld [vmem:[%s0 + $0x1c8] sm:$0xff]
  %v85 = vld [vmem:[%s0 + $0x1d0] sm:$0xff]
  %v86 = vld [vmem:[%s0 + $0x1d8] sm:$0xff]
  %v87 = vld [vmem:[%s0 + $0x1e0] sm:$0xff]
  %v88 = vld [vmem:[%s0 + $0x1e8] sm:$0xff]
  %v89 = vld [vmem:[%s0 + $0x1f0] sm:$0xff]
  %v90 = vld [vmem:[%s0 + $0x1f8] sm:$0xff]
  %v91 = vld [vmem:[%s1] sm:$0xff]
  %v92 = vld [vmem:[%s1 + $0x8] sm:$0xff]
  %v93 = vld [vmem:[%s2] sm:$0x1]
  %v95 = vperm.slane %v93, 0
  %vm97 = vcmask 130048
  %v99 = vsel %vm97, %v27, 0
  %v102 = vsel %vm97, %v28, 0
  %v105 = vsel %vm97, %v29, 0
  %v108 = vsel %vm97, %v30, 0
  %v111 = vsel %vm97, %v31, 0
  %v114 = vsel %vm97, %v32, 0
  %v117 = vsel %vm97, %v33, 0
  %v120 = vsel %vm97, %v34, 0
  %v123 = vsel %vm97, %v35, 0
  %v126 = vsel %vm97, %v36, 0
  %v129 = vsel %vm97, %v37, 0
  %v132 = vsel %vm97, %v38, 0
  %v135 = vsel %vm97, %v39, 0
  %v138 = vsel %vm97, %v40, 0
  %v141 = vsel %vm97, %v41, 0
  %v144 = vsel %vm97, %v42, 0
  %v147 = vsel %vm97, %v43, 0
  %v150 = vsel %vm97, %v44, 0
  %v153 = vsel %vm97, %v45, 0
  %v156 = vsel %vm97, %v46, 0
  %v159 = vsel %vm97, %v47, 0
  %v162 = vsel %vm97, %v48, 0
  %v165 = vsel %vm97, %v49, 0
  %v168 = vsel %vm97, %v50, 0
  %v171 = vsel %vm97, %v51, 0
  %v174 = vsel %vm97, %v52, 0
  %v177 = vsel %vm97, %v53, 0
  %v180 = vsel %vm97, %v54, 0
  %v183 = vsel %vm97, %v55, 0
  %v186 = vsel %vm97, %v56, 0
  %v189 = vsel %vm97, %v57, 0
  %v192 = vsel %vm97, %v58, 0
  %v195 = vsel %vm97, %v59, 0
  %v198 = vsel %vm97, %v60, 0
  %v201 = vsel %vm97, %v61, 0
  %v204 = vsel %vm97, %v62, 0
  %v207 = vsel %vm97, %v63, 0
  %v210 = vsel %vm97, %v64, 0
  %v213 = vsel %vm97, %v65, 0
  %v216 = vsel %vm97, %v66, 0
  %v219 = vsel %vm97, %v67, 0
  %v222 = vsel %vm97, %v68, 0
  %v225 = vsel %vm97, %v69, 0
  %v228 = vsel %vm97, %v70, 0
  %v231 = vsel %vm97, %v71, 0
  %v234 = vsel %vm97, %v72, 0
  %v237 = vsel %vm97, %v73, 0
  %v240 = vsel %vm97, %v74, 0
  %v243 = vsel %vm97, %v75, 0
  %v246 = vsel %vm97, %v76, 0
  %v249 = vsel %vm97, %v77, 0
  %v252 = vsel %vm97, %v78, 0
  %v255 = vsel %vm97, %v79, 0
  %v258 = vsel %vm97, %v80, 0
  %v261 = vsel %vm97, %v81, 0
  %v264 = vsel %vm97, %v82, 0
  %v267 = vsel %vm97, %v83, 0
  %v270 = vsel %vm97, %v84, 0
  %v273 = vsel %vm97, %v85, 0
  %v276 = vsel %vm97, %v86, 0
  %v279 = vsel %vm97, %v87, 0
  %v282 = vsel %vm97, %v88, 0
  %v285 = vsel %vm97, %v89, 0
  %v288 = vsel %vm97, %v90, 0
  %290 = vmatpush.msra.mxu0 0.0
  %291 = vmatpush.msra.mxu0 0.0
  %292 = vmatpush.msra.mxu0 0.0
  %293 = vmatpush.msra.mxu0 0.0
  %294 = vmatpush.msra.mxu0 0.0
  %295 = vmatpush.msra.mxu0 0.0
  %296 = vmatpush.msra.mxu0 0.0
  %297 = vmatpush.msra.mxu0 0.0
  %298 = vmatpush.msra.mxu0 0.0
  %299 = vmatpush.msra.mxu0 0.0
  %300 = vmatpush.msra.mxu0 0.0
  %301 = vmatpush.msra.mxu0 0.0
  %302 = vmatpush.msra.mxu0 0.0
  %303 = vmatpush.msra.mxu0 0.0
  %304 = vmatpush.msra.mxu0 %v92
  %305 = vmatpush.msra.mxu0 %v91
  %306 = vmatmul.f32.gmra.mxu0 %v99
  %v307 = vpop.f32.mrf.mxu0
  %v308 = vadd.f32 %v95, %v307
  %309 = vmatmul.f32.gmra.mxu0 %v102
  %v310 = vpop.f32.mrf.mxu0
  %v311 = vadd.f32 %v95, %v310
  %312 = vmatmul.f32.gmra.mxu0 %v105
  %v313 = vpop.f32.mrf.mxu0
  %v314 = vadd.f32 %v95, %v313
  %315 = vmatmul.f32.gmra.mxu0 %v108
  %v316 = vpop.f32.mrf.mxu0
  %v317 = vadd.f32 %v95, %v316
  %318 = vmatmul.f32.gmra.mxu0 %v111
  %v319 = vpop.f32.mrf.mxu0
  %v320 = vadd.f32 %v95, %v319
  %321 = vmatmul.f32.gmra.mxu0 %v114
  %v322 = vpop.f32.mrf.mxu0
  %v323 = vadd.f32 %v95, %v322
  %324 = vmatmul.f32.gmra.mxu0 %v117
  %v325 = vpop.f32.mrf.mxu0
  %v326 = vadd.f32 %v95, %v325
  %327 = vmatmul.f32.gmra.mxu0 %v120
  %v328 = vpop.f32.mrf.mxu0
  %v329 = vadd.f32 %v95, %v328
  %330 = vmatmul.f32.gmra.mxu0 %v123
  %v331 = vpop.f32.mrf.mxu0
  %v332 = vadd.f32 %v95, %v331
  %333 = vmatmul.f32.gmra.mxu0 %v126
  %v334 = vpop.f32.mrf.mxu0
  %v335 = vadd.f32 %v95, %v334
  %336 = vmatmul.f32.gmra.mxu0 %v129
  %v337 = vpop.f32.mrf.mxu0
  %v338 = vadd.f32 %v95, %v337
  %339 = vmatmul.f32.gmra.mxu0 %v132
  %v340 = vpop.f32.mrf.mxu0
  %v341 = vadd.f32 %v95, %v340
  %342 = vmatmul.f32.gmra.mxu0 %v135
  %v343 = vpop.f32.mrf.mxu0
  %v344 = vadd.f32 %v95, %v343
  %345 = vmatmul.f32.gmra.mxu0 %v138
  %v346 = vpop.f32.mrf.mxu0
  %v347 = vadd.f32 %v95, %v346
  %348 = vmatmul.f32.gmra.mxu0 %v141
  %v349 = vpop.f32.mrf.mxu0
  %v350 = vadd.f32 %v95, %v349
  %351 = vmatmul.f32.gmra.mxu0 %v144
  %v352 = vpop.f32.mrf.mxu0
  %v353 = vadd.f32 %v95, %v352
  %354 = vmatmul.f32.gmra.mxu0 %v147
  %v355 = vpop.f32.mrf.mxu0
  %v356 = vadd.f32 %v95, %v355
  %357 = vmatmul.f32.gmra.mxu0 %v150
  %v358 = vpop.f32.mrf.mxu0
  %v359 = vadd.f32 %v95, %v358
  %360 = vmatmul.f32.gmra.mxu0 %v153
  %v361 = vpop.f32.mrf.mxu0
  %v362 = vadd.f32 %v95, %v361
  %363 = vmatmul.f32.gmra.mxu0 %v156
  %v364 = vpop.f32.mrf.mxu0
  %v365 = vadd.f32 %v95, %v364
  %366 = vmatmul.f32.gmra.mxu0 %v159
  %v367 = vpop.f32.mrf.mxu0
  %v368 = vadd.f32 %v95, %v367
  %369 = vmatmul.f32.gmra.mxu0 %v162
  %v370 = vpop.f32.mrf.mxu0
  %v371 = vadd.f32 %v95, %v370
  %372 = vmatmul.f32.gmra.mxu0 %v165
  %v373 = vpop.f32.mrf.mxu0
  %v374 = vadd.f32 %v95, %v373
  %375 = vmatmul.f32.gmra.mxu0 %v168
  %v376 = vpop.f32.mrf.mxu0
  %v377 = vadd.f32 %v95, %v376
  %378 = vmatmul.f32.gmra.mxu0 %v171
  %v379 = vpop.f32.mrf.mxu0
  %v380 = vadd.f32 %v95, %v379
  %381 = vmatmul.f32.gmra.mxu0 %v174
  %v382 = vpop.f32.mrf.mxu0
  %v383 = vadd.f32 %v95, %v382
  %384 = vmatmul.f32.gmra.mxu0 %v177
  %v385 = vpop.f32.mrf.mxu0
  %v386 = vadd.f32 %v95, %v385
  %387 = vmatmul.f32.gmra.mxu0 %v180
  %v388 = vpop.f32.mrf.mxu0
  %v389 = vadd.f32 %v95, %v388
  %390 = vmatmul.f32.gmra.mxu0 %v183
  %v391 = vpop.f32.mrf.mxu0
  %v392 = vadd.f32 %v95, %v391
  %393 = vmatmul.f32.gmra.mxu0 %v186
  %v394 = vpop.f32.mrf.mxu0
  %v395 = vadd.f32 %v95, %v394
  %396 = vmatmul.f32.gmra.mxu0 %v189
  %v397 = vpop.f32.mrf.mxu0
  %v398 = vadd.f32 %v95, %v397
  %399 = vmatmul.f32.gmra.mxu0 %v192
  %v400 = vpop.f32.mrf.mxu0
  %v401 = vadd.f32 %v95, %v400
  %402 = vmatmul.f32.gmra.mxu0 %v195
  %v403 = vpop.f32.mrf.mxu0
  %v404 = vadd.f32 %v95, %v403
  %405 = vmatmul.f32.gmra.mxu0 %v198
  %v406 = vpop.f32.mrf.mxu0
  %v407 = vadd.f32 %v95, %v406
  %408 = vmatmul.f32.gmra.mxu0 %v201
  %v409 = vpop.f32.mrf.mxu0
  %v410 = vadd.f32 %v95, %v409
  %411 = vmatmul.f32.gmra.mxu0 %v204
  %v412 = vpop.f32.mrf.mxu0
  %v413 = vadd.f32 %v95, %v412
  %414 = vmatmul.f32.gmra.mxu0 %v207
  %v415 = vpop.f32.mrf.mxu0
  %v416 = vadd.f32 %v95, %v415
  %417 = vmatmul.f32.gmra.mxu0 %v210
  %v418 = vpop.f32.mrf.mxu0
  %v419 = vadd.f32 %v95, %v418
  %420 = vmatmul.f32.gmra.mxu0 %v213
  %v421 = vpop.f32.mrf.mxu0
  %v422 = vadd.f32 %v95, %v421
  %423 = vmatmul.f32.gmra.mxu0 %v216
  %v424 = vpop.f32.mrf.mxu0
  %v425 = vadd.f32 %v95, %v424
  %426 = vmatmul.f32.gmra.mxu0 %v219
  %v427 = vpop.f32.mrf.mxu0
  %v428 = vadd.f32 %v95, %v427
  %429 = vmatmul.f32.gmra.mxu0 %v222
  %v430 = vpop.f32.mrf.mxu0
  %v431 = vadd.f32 %v95, %v430
  %432 = vmatmul.f32.gmra.mxu0 %v225
  %v433 = vpop.f32.mrf.mxu0
  %v434 = vadd.f32 %v95, %v433
  %435 = vmatmul.f32.gmra.mxu0 %v228
  %v436 = vpop.f32.mrf.mxu0
  %v437 = vadd.f32 %v95, %v436
  %438 = vmatmul.f32.gmra.mxu0 %v231
  %v439 = vpop.f32.mrf.mxu0
  %v440 = vadd.f32 %v95, %v439
  %441 = vmatmul.f32.gmra.mxu0 %v234
  %v442 = vpop.f32.mrf.mxu0
  %v443 = vadd.f32 %v95, %v442
  %444 = vmatmul.f32.gmra.mxu0 %v237
  %v445 = vpop.f32.mrf.mxu0
  %v446 = vadd.f32 %v95, %v445
  %447 = vmatmul.f32.gmra.mxu0 %v240
  %v448 = vpop.f32.mrf.mxu0
  %v449 = vadd.f32 %v95, %v448
  %450 = vmatmul.f32.gmra.mxu0 %v243
  %v451 = vpop.f32.mrf.mxu0
  %v452 = vadd.f32 %v95, %v451
  %453 = vmatmul.f32.gmra.mxu0 %v246
  %v454 = vpop.f32.mrf.mxu0
  %v455 = vadd.f32 %v95, %v454
  %456 = vmatmul.f32.gmra.mxu0 %v249
  %v457 = vpop.f32.mrf.mxu0
  %v458 = vadd.f32 %v95, %v457
  %459 = vmatmul.f32.gmra.mxu0 %v252
  %v460 = vpop.f32.mrf.mxu0
  %v461 = vadd.f32 %v95, %v460
  %462 = vmatmul.f32.gmra.mxu0 %v255
  %v463 = vpop.f32.mrf.mxu0
  %v464 = vadd.f32 %v95, %v463
  %465 = vmatmul.f32.gmra.mxu0 %v258
  %v466 = vpop.f32.mrf.mxu0
  %v467 = vadd.f32 %v95, %v466
  %468 = vmatmul.f32.gmra.mxu0 %v261
  %v469 = vpop.f32.mrf.mxu0
  %v470 = vadd.f32 %v95, %v469
  %471 = vmatmul.f32.gmra.mxu0 %v264
  %v472 = vpop.f32.mrf.mxu0
  %v473 = vadd.f32 %v95, %v472
  %474 = vmatmul.f32.gmra.mxu0 %v267
  %v475 = vpop.f32.mrf.mxu0
  %v476 = vadd.f32 %v95, %v475
  %477 = vmatmul.f32.gmra.mxu0 %v270
  %v478 = vpop.f32.mrf.mxu0
  %v479 = vadd.f32 %v95, %v478
  %480 = vmatmul.f32.gmra.mxu0 %v273
  %v481 = vpop.f32.mrf.mxu0
  %v482 = vadd.f32 %v95, %v481
  %483 = vmatmul.f32.gmra.mxu0 %v276
  %v484 = vpop.f32.mrf.mxu0
  %v485 = vadd.f32 %v95, %v484
  %486 = vmatmul.f32.gmra.mxu0 %v279
  %v487 = vpop.f32.mrf.mxu0
  %v488 = vadd.f32 %v95, %v487
  %489 = vmatmul.f32.gmra.mxu0 %v282
  %v490 = vpop.f32.mrf.mxu0
  %v491 = vadd.f32 %v95, %v490
  %492 = vmatmul.f32.gmra.mxu0 %v285
  %v493 = vpop.f32.mrf.mxu0
  %v494 = vadd.f32 %v95, %v493
  %495 = vmatmul.f32.gmra.mxu0 %v288
  %v496 = vpop.f32.mrf.mxu0
  %v497 = vadd.f32 %v95, %v496
  %498 = vdwg.mxu0
  %v499 = vmax.f32 %v308, 0.0
  %v500 = vmax.f32 %v311, 0.0
  %v501 = vmax.f32 %v314, 0.0
  %v502 = vmax.f32 %v317, 0.0
  %v503 = vmax.f32 %v320, 0.0
  %v504 = vmax.f32 %v323, 0.0
  %v505 = vmax.f32 %v326, 0.0
  %v506 = vmax.f32 %v329, 0.0
  %v507 = vmax.f32 %v332, 0.0
  %v508 = vmax.f32 %v335, 0.0
  %v509 = vmax.f32 %v338, 0.0
  %v510 = vmax.f32 %v341, 0.0
  %v511 = vmax.f32 %v344, 0.0
  %v512 = vmax.f32 %v347, 0.0
  %v513 = vmax.f32 %v350, 0.0
  %v514 = vmax.f32 %v353, 0.0
  %v515 = vmax.f32 %v356, 0.0
  %v516 = vmax.f32 %v359, 0.0
  %v517 = vmax.f32 %v362, 0.0
  %v518 = vmax.f32 %v365, 0.0
  %v519 = vmax.f32 %v368, 0.0
  %v520 = vmax.f32 %v371, 0.0
  %v521 = vmax.f32 %v374, 0.0
  %v522 = vmax.f32 %v377, 0.0
  %v523 = vmax.f32 %v380, 0.0
  %v524 = vmax.f32 %v383, 0.0
  %v525 = vmax.f32 %v386, 0.0
  %v526 = vmax.f32 %v389, 0.0
  %v527 = vmax.f32 %v392, 0.0
  %v528 = vmax.f32 %v395, 0.0
  %v529 = vmax.f32 %v398, 0.0
  %v530 = vmax.f32 %v401, 0.0
  %v531 = vmax.f32 %v404, 0.0
  %v532 = vmax.f32 %v407, 0.0
  %v533 = vmax.f32 %v410, 0.0
  %v534 = vmax.f32 %v413, 0.0
  %v535 = vmax.f32 %v416, 0.0
  %v536 = vmax.f32 %v419, 0.0
  %v537 = vmax.f32 %v422, 0.0
  %v538 = vmax.f32 %v425, 0.0
  %v539 = vmax.f32 %v428, 0.0
  %v540 = vmax.f32 %v431, 0.0
  %v541 = vmax.f32 %v434, 0.0
  %v542 = vmax.f32 %v437, 0.0
  %v543 = vmax.f32 %v440, 0.0
  %v544 = vmax.f32 %v443, 0.0
  %v545 = vmax.f32 %v446, 0.0
  %v546 = vmax.f32 %v449, 0.0
  %v547 = vmax.f32 %v452, 0.0
  %v548 = vmax.f32 %v455, 0.0
  %v549 = vmax.f32 %v458, 0.0
  %v550 = vmax.f32 %v461, 0.0
  %v551 = vmax.f32 %v464, 0.0
  %v552 = vmax.f32 %v467, 0.0
  %v553 = vmax.f32 %v470, 0.0
  %v554 = vmax.f32 %v473, 0.0
  %v555 = vmax.f32 %v476, 0.0
  %v556 = vmax.f32 %v479, 0.0
  %v557 = vmax.f32 %v482, 0.0
  %v558 = vmax.f32 %v485, 0.0
  %v559 = vmax.f32 %v488, 0.0
  %v560 = vmax.f32 %v491, 0.0
  %v561 = vmax.f32 %v494, 0.0
  %v562 = vmax.f32 %v497, 0.0
  %v563 = vld [vmem:[%s3] sm:$0xff]
  %v564 = vld [vmem:[%s3 + $0x8] sm:$0xff]
  %v565 = vld [vmem:[%s3 + $0x10] sm:$0xff]
  %v566 = vld [vmem:[%s3 + $0x18] sm:$0xff]
  %v567 = vld [vmem:[%s3 + $0x20] sm:$0xff]
  %v568 = vld [vmem:[%s3 + $0x28] sm:$0xff]
  %v569 = vld [vmem:[%s3 + $0x30] sm:$0xff]
  %v570 = vld [vmem:[%s3 + $0x38] sm:$0xff]
  %v571 = vld [vmem:[%s3 + $0x40] sm:$0xff]
  %v572 = vld [vmem:[%s3 + $0x48] sm:$0xff]
  %v573 = vld [vmem:[%s3 + $0x50] sm:$0xff]
  %v574 = vld [vmem:[%s3 + $0x58] sm:$0xff]
  %v575 = vld [vmem:[%s3 + $0x60] sm:$0xff]
  %v576 = vld [vmem:[%s3 + $0x68] sm:$0xff]
  %v577 = vld [vmem:[%s3 + $0x70] sm:$0xff]
  %v578 = vld [vmem:[%s3 + $0x78] sm:$0xff]
  %v579 = vld [vmem:[%s4] sm:$0x1]
  %v581 = vperm.slane %v579, 0
  %583 = vmatpush.msra.mxu0 %v578
  %584 = vmatpush.msra.mxu0 %v577
  %585 = vmatpush.msra.mxu0 %v576
  %586 = vmatpush.msra.mxu0 %v575
  %587 = vmatpush.msra.mxu0 %v574
  %588 = vmatpush.msra.mxu0 %v573
  %589 = vmatpush.msra.mxu0 %v572
  %590 = vmatpush.msra.mxu0 %v571
  %591 = vmatpush.msra.mxu0 %v570
  %592 = vmatpush.msra.mxu0 %v569
  %593 = vmatpush.msra.mxu0 %v568
  %594 = vmatpush.msra.mxu0 %v567
  %595 = vmatpush.msra.mxu0 %v566
  %596 = vmatpush.msra.mxu0 %v565
  %597 = vmatpush.msra.mxu0 %v564
  %598 = vmatpush.msra.mxu0 %v563
  %599 = vmatmul.f32.gmra.mxu0 %v499
  %v600 = vpop.f32.mrf.mxu0
  %v601 = vadd.f32 %v581, %v600
  %602 = vmatmul.f32.gmra.mxu0 %v500
  %v603 = vpop.f32.mrf.mxu0
  %v604 = vadd.f32 %v581, %v603
  %605 = vmatmul.f32.gmra.mxu0 %v501
  %v606 = vpop.f32.mrf.mxu0
  %v607 = vadd.f32 %v581, %v606
  %608 = vmatmul.f32.gmra.mxu0 %v502
  %v609 = vpop.f32.mrf.mxu0
  %v610 = vadd.f32 %v581, %v609
  %611 = vmatmul.f32.gmra.mxu0 %v503
  %v612 = vpop.f32.mrf.mxu0
  %v613 = vadd.f32 %v581, %v612
  %614 = vmatmul.f32.gmra.mxu0 %v504
  %v615 = vpop.f32.mrf.mxu0
  %v616 = vadd.f32 %v581, %v615
  %617 = vmatmul.f32.gmra.mxu0 %v505
  %v618 = vpop.f32.mrf.mxu0
  %v619 = vadd.f32 %v581, %v618
  %620 = vmatmul.f32.gmra.mxu0 %v506
  %v621 = vpop.f32.mrf.mxu0
  %v622 = vadd.f32 %v581, %v621
  %623 = vmatmul.f32.gmra.mxu0 %v507
  %v624 = vpop.f32.mrf.mxu0
  %v625 = vadd.f32 %v581, %v624
  %626 = vmatmul.f32.gmra.mxu0 %v508
  %v627 = vpop.f32.mrf.mxu0
  %v628 = vadd.f32 %v581, %v627
  %629 = vmatmul.f32.gmra.mxu0 %v509
  %v630 = vpop.f32.mrf.mxu0
  %v631 = vadd.f32 %v581, %v630
  %632 = vmatmul.f32.gmra.mxu0 %v510
  %v633 = vpop.f32.mrf.mxu0
  %v634 = vadd.f32 %v581, %v633
  %635 = vmatmul.f32.gmra.mxu0 %v511
  %v636 = vpop.f32.mrf.mxu0
  %v637 = vadd.f32 %v581, %v636
  %638 = vmatmul.f32.gmra.mxu0 %v512
  %v639 = vpop.f32.mrf.mxu0
  %v640 = vadd.f32 %v581, %v639
  %641 = vmatmul.f32.gmra.mxu0 %v513
  %v642 = vpop.f32.mrf.mxu0
  %v643 = vadd.f32 %v581, %v642
  %644 = vmatmul.f32.gmra.mxu0 %v514
  %v645 = vpop.f32.mrf.mxu0
  %v646 = vadd.f32 %v581, %v645
  %647 = vmatmul.f32.gmra.mxu0 %v515
  %v648 = vpop.f32.mrf.mxu0
  %v649 = vadd.f32 %v581, %v648
  %650 = vmatmul.f32.gmra.mxu0 %v516
  %v651 = vpop.f32.mrf.mxu0
  %v652 = vadd.f32 %v581, %v651
  %653 = vmatmul.f32.gmra.mxu0 %v517
  %v654 = vpop.f32.mrf.mxu0
  %v655 = vadd.f32 %v581, %v654
  %656 = vmatmul.f32.gmra.mxu0 %v518
  %v657 = vpop.f32.mrf.mxu0
  %v658 = vadd.f32 %v581, %v657
  %659 = vmatmul.f32.gmra.mxu0 %v519
  %v660 = vpop.f32.mrf.mxu0
  %v661 = vadd.f32 %v581, %v660
  %662 = vmatmul.f32.gmra.mxu0 %v520
  %v663 = vpop.f32.mrf.mxu0
  %v664 = vadd.f32 %v581, %v663
  %665 = vmatmul.f32.gmra.mxu0 %v521
  %v666 = vpop.f32.mrf.mxu0
  %v667 = vadd.f32 %v581, %v666
  %668 = vmatmul.f32.gmra.mxu0 %v522
  %v669 = vpop.f32.mrf.mxu0
  %v670 = vadd.f32 %v581, %v669
  %671 = vmatmul.f32.gmra.mxu0 %v523
  %v672 = vpop.f32.mrf.mxu0
  %v673 = vadd.f32 %v581, %v672
  %674 = vmatmul.f32.gmra.mxu0 %v524
  %v675 = vpop.f32.mrf.mxu0
  %v676 = vadd.f32 %v581, %v675
  %677 = vmatmul.f32.gmra.mxu0 %v525
  %v678 = vpop.f32.mrf.mxu0
  %v679 = vadd.f32 %v581, %v678
  %680 = vmatmul.f32.gmra.mxu0 %v526
  %v681 = vpop.f32.mrf.mxu0
  %v682 = vadd.f32 %v581, %v681
  %683 = vmatmul.f32.gmra.mxu0 %v527
  %v684 = vpop.f32.mrf.mxu0
  %v685 = vadd.f32 %v581, %v684
  %686 = vmatmul.f32.gmra.mxu0 %v528
  %v687 = vpop.f32.mrf.mxu0
  %v688 = vadd.f32 %v581, %v687
  %689 = vmatmul.f32.gmra.mxu0 %v529
  %v690 = vpop.f32.mrf.mxu0
  %v691 = vadd.f32 %v581, %v690
  %692 = vmatmul.f32.gmra.mxu0 %v530
  %v693 = vpop.f32.mrf.mxu0
  %v694 = vadd.f32 %v581, %v693
  %695 = vmatmul.f32.gmra.mxu0 %v531
  %v696 = vpop.f32.mrf.mxu0
  %v697 = vadd.f32 %v581, %v696
  %698 = vmatmul.f32.gmra.mxu0 %v532
  %v699 = vpop.f32.mrf.mxu0
  %v700 = vadd.f32 %v581, %v699
  %701 = vmatmul.f32.gmra.mxu0 %v533
  %v702 = vpop.f32.mrf.mxu0
  %v703 = vadd.f32 %v581, %v702
  %704 = vmatmul.f32.gmra.mxu0 %v534
  %v705 = vpop.f32.mrf.mxu0
  %v706 = vadd.f32 %v581, %v705
  %707 = vmatmul.f32.gmra.mxu0 %v535
  %v708 = vpop.f32.mrf.mxu0
  %v709 = vadd.f32 %v581, %v708
  %710 = vmatmul.f32.gmra.mxu0 %v536
  %v711 = vpop.f32.mrf.mxu0
  %v712 = vadd.f32 %v581, %v711
  %713 = vmatmul.f32.gmra.mxu0 %v537
  %v714 = vpop.f32.mrf.mxu0
  %v715 = vadd.f32 %v581, %v714
  %716 = vmatmul.f32.gmra.mxu0 %v538
  %v717 = vpop.f32.mrf.mxu0
  %v718 = vadd.f32 %v581, %v717
  %719 = vmatmul.f32.gmra.mxu0 %v539
  %v720 = vpop.f32.mrf.mxu0
  %v721 = vadd.f32 %v581, %v720
  %722 = vmatmul.f32.gmra.mxu0 %v540
  %v723 = vpop.f32.mrf.mxu0
  %v724 = vadd.f32 %v581, %v723
  %725 = vmatmul.f32.gmra.mxu0 %v541
  %v726 = vpop.f32.mrf.mxu0
  %v727 = vadd.f32 %v581, %v726
  %728 = vmatmul.f32.gmra.mxu0 %v542
  %v729 = vpop.f32.mrf.mxu0
  %v730 = vadd.f32 %v581, %v729
  %731 = vmatmul.f32.gmra.mxu0 %v543
  %v732 = vpop.f32.mrf.mxu0
  %v733 = vadd.f32 %v581, %v732
  %734 = vmatmul.f32.gmra.mxu0 %v544
  %v735 = vpop.f32.mrf.mxu0
  %v736 = vadd.f32 %v581, %v735
  %737 = vmatmul.f32.gmra.mxu0 %v545
  %v738 = vpop.f32.mrf.mxu0
  %v739 = vadd.f32 %v581, %v738
  %740 = vmatmul.f32.gmra.mxu0 %v546
  %v741 = vpop.f32.mrf.mxu0
  %v742 = vadd.f32 %v581, %v741
  %743 = vmatmul.f32.gmra.mxu0 %v547
  %v744 = vpop.f32.mrf.mxu0
  %v745 = vadd.f32 %v581, %v744
  %746 = vmatmul.f32.gmra.mxu0 %v548
  %v747 = vpop.f32.mrf.mxu0
  %v748 = vadd.f32 %v581, %v747
  %749 = vmatmul.f32.gmra.mxu0 %v549
  %v750 = vpop.f32.mrf.mxu0
  %v751 = vadd.f32 %v581, %v750
  %752 = vmatmul.f32.gmra.mxu0 %v550
  %v753 = vpop.f32.mrf.mxu0
  %v754 = vadd.f32 %v581, %v753
  %755 = vmatmul.f32.gmra.mxu0 %v551
  %v756 = vpop.f32.mrf.mxu0
  %v757 = vadd.f32 %v581, %v756
  %758 = vmatmul.f32.gmra.mxu0 %v552
  %v759 = vpop.f32.mrf.mxu0
  %v760 = vadd.f32 %v581, %v759
  %761 = vmatmul.f32.gmra.mxu0 %v553
  %v762 = vpop.f32.mrf.mxu0
  %v763 = vadd.f32 %v581, %v762
  %764 = vmatmul.f32.gmra.mxu0 %v554
  %v765 = vpop.f32.mrf.mxu0
  %v766 = vadd.f32 %v581, %v765
  %767 = vmatmul.f32.gmra.mxu0 %v555
  %v768 = vpop.f32.mrf.mxu0
  %v769 = vadd.f32 %v581, %v768
  %770 = vmatmul.f32.gmra.mxu0 %v556
  %v771 = vpop.f32.mrf.mxu0
  %v772 = vadd.f32 %v581, %v771
  %773 = vmatmul.f32.gmra.mxu0 %v557
  %v774 = vpop.f32.mrf.mxu0
  %v775 = vadd.f32 %v581, %v774
  %776 = vmatmul.f32.gmra.mxu0 %v558
  %v777 = vpop.f32.mrf.mxu0
  %v778 = vadd.f32 %v581, %v777
  %779 = vmatmul.f32.gmra.mxu0 %v559
  %v780 = vpop.f32.mrf.mxu0
  %v781 = vadd.f32 %v581, %v780
  %782 = vmatmul.f32.gmra.mxu0 %v560
  %v783 = vpop.f32.mrf.mxu0
  %v784 = vadd.f32 %v581, %v783
  %785 = vmatmul.f32.gmra.mxu0 %v561
  %v786 = vpop.f32.mrf.mxu0
  %v787 = vadd.f32 %v581, %v786
  %788 = vmatmul.f32.gmra.mxu0 %v562
  %v789 = vpop.f32.mrf.mxu0
  %v790 = vadd.f32 %v581, %v789
  %791 = vdwg.mxu0
  %v792 = vmax.f32 %v601, 0.0
  %v793 = vmax.f32 %v604, 0.0
  %v794 = vmax.f32 %v607, 0.0
  %v795 = vmax.f32 %v610, 0.0
  %v796 = vmax.f32 %v613, 0.0
  %v797 = vmax.f32 %v616, 0.0
  %v798 = vmax.f32 %v619, 0.0
  %v799 = vmax.f32 %v622, 0.0
  %v800 = vmax.f32 %v625, 0.0
  %v801 = vmax.f32 %v628, 0.0
  %v802 = vmax.f32 %v631, 0.0
  %v803 = vmax.f32 %v634, 0.0
  %v804 = vmax.f32 %v637, 0.0
  %v805 = vmax.f32 %v640, 0.0
  %v806 = vmax.f32 %v643, 0.0
  %v807 = vmax.f32 %v646, 0.0
  %v808 = vmax.f32 %v649, 0.0
  %v809 = vmax.f32 %v652, 0.0
  %v810 = vmax.f32 %v655, 0.0
  %v811 = vmax.f32 %v658, 0.0
  %v812 = vmax.f32 %v661, 0.0
  %v813 = vmax.f32 %v664, 0.0
  %v814 = vmax.f32 %v667, 0.0
  %v815 = vmax.f32 %v670, 0.0
  %v816 = vmax.f32 %v673, 0.0
  %v817 = vmax.f32 %v676, 0.0
  %v818 = vmax.f32 %v679, 0.0
  %v819 = vmax.f32 %v682, 0.0
  %v820 = vmax.f32 %v685, 0.0
  %v821 = vmax.f32 %v688, 0.0
  %v822 = vmax.f32 %v691, 0.0
  %v823 = vmax.f32 %v694, 0.0
  %v824 = vmax.f32 %v697, 0.0
  %v825 = vmax.f32 %v700, 0.0
  %v826 = vmax.f32 %v703, 0.0
  %v827 = vmax.f32 %v706, 0.0
  %v828 = vmax.f32 %v709, 0.0
  %v829 = vmax.f32 %v712, 0.0
  %v830 = vmax.f32 %v715, 0.0
  %v831 = vmax.f32 %v718, 0.0
  %v832 = vmax.f32 %v721, 0.0
  %v833 = vmax.f32 %v724, 0.0
  %v834 = vmax.f32 %v727, 0.0
  %v835 = vmax.f32 %v730, 0.0
  %v836 = vmax.f32 %v733, 0.0
  %v837 = vmax.f32 %v736, 0.0
  %v838 = vmax.f32 %v739, 0.0
  %v839 = vmax.f32 %v742, 0.0
  %v840 = vmax.f32 %v745, 0.0
  %v841 = vmax.f32 %v748, 0.0
  %v842 = vmax.f32 %v751, 0.0
  %v843 = vmax.f32 %v754, 0.0
  %v844 = vmax.f32 %v757, 0.0
  %v845 = vmax.f32 %v760, 0.0
  %v846 = vmax.f32 %v763, 0.0
  %v847 = vmax.f32 %v766, 0.0
  %v848 = vmax.f32 %v769, 0.0
  %v849 = vmax.f32 %v772, 0.0
  %v850 = vmax.f32 %v775, 0.0
  %v851 = vmax.f32 %v778, 0.0
  %v852 = vmax.f32 %v781, 0.0
  %v853 = vmax.f32 %v784, 0.0
  %v854 = vmax.f32 %v787, 0.0
  %v855 = vmax.f32 %v790, 0.0
  %v856 = vld [vmem:[%s5] sm:$0x1]
  %v858 = vperm.slane %v856, 0
  %v860 = vmul.f32 %v792, %v858
  %v861 = vmul.f32 %v793, %v858
  %v862 = vmul.f32 %v794, %v858
  %v863 = vmul.f32 %v795, %v858
  %v864 = vmul.f32 %v796, %v858
  %v865 = vmul.f32 %v797, %v858
  %v866 = vmul.f32 %v798, %v858
  %v867 = vmul.f32 %v799, %v858
  %v868 = vmul.f32 %v800, %v858
  %v869 = vmul.f32 %v801, %v858
  %v870 = vmul.f32 %v802, %v858
  %v871 = vmul.f32 %v803, %v858
  %v872 = vmul.f32 %v804, %v858
  %v873 = vmul.f32 %v805, %v858
  %v874 = vmul.f32 %v806, %v858
  %v875 = vmul.f32 %v807, %v858
  %v876 = vmul.f32 %v808, %v858
  %v877 = vmul.f32 %v809, %v858
  %v878 = vmul.f32 %v810, %v858
  %v879 = vmul.f32 %v811, %v858
  %v880 = vmul.f32 %v812, %v858
  %v881 = vmul.f32 %v813, %v858
  %v882 = vmul.f32 %v814, %v858
  %v883 = vmul.f32 %v815, %v858
  %v884 = vmul.f32 %v816, %v858
  %v885 = vmul.f32 %v817, %v858
  %v886 = vmul.f32 %v818, %v858
  %v887 = vmul.f32 %v819, %v858
  %v888 = vmul.f32 %v820, %v858
  %v889 = vmul.f32 %v821, %v858
  %v890 = vmul.f32 %v822, %v858
  %v891 = vmul.f32 %v823, %v858
  %v892 = vmul.f32 %v824, %v858
  %v893 = vmul.f32 %v825, %v858
  %v894 = vmul.f32 %v826, %v858
  %v895 = vmul.f32 %v827, %v858
  %v896 = vmul.f32 %v828, %v858
  %v897 = vmul.f32 %v829, %v858
  %v898 = vmul.f32 %v830, %v858
  %v899 = vmul.f32 %v831, %v858
  %v900 = vmul.f32 %v832, %v858
  %v901 = vmul.f32 %v833, %v858
  %v902 = vmul.f32 %v834, %v858
  %v903 = vmul.f32 %v835, %v858
  %v904 = vmul.f32 %v836, %v858
  %v905 = vmul.f32 %v837, %v858
  %v906 = vmul.f32 %v838, %v858
  %v907 = vmul.f32 %v839, %v858
  %v908 = vmul.f32 %v840, %v858
  %v909 = vmul.f32 %v841, %v858
  %v910 = vmul.f32 %v842, %v858
  %v911 = vmul.f32 %v843, %v858
  %v912 = vmul.f32 %v844, %v858
  %v913 = vmul.f32 %v845, %v858
  %v914 = vmul.f32 %v846, %v858
  %v915 = vmul.f32 %v847, %v858
  %v916 = vmul.f32 %v848, %v858
  %v917 = vmul.f32 %v849, %v858
  %v918 = vmul.f32 %v850, %v858
  %v919 = vmul.f32 %v851, %v858
  %v920 = vmul.f32 %v852, %v858
  %v921 = vmul.f32 %v853, %v858
  %v922 = vmul.f32 %v854, %v858
  %v923 = vmul.f32 %v855, %v858
  %924 = vadd.xlane.f32.xlu0 %v860
  %v925 = vpop.xlane.xlu0 %924
  %926 = vadd.xlane.f32.xlu0 %v861
  %v927 = vpop.xlane.xlu0 %926
  %928 = vadd.xlane.f32.xlu0 %v862
  %v929 = vpop.xlane.xlu0 %928
  %930 = vadd.xlane.f32.xlu0 %v863
  %v931 = vpop.xlane.xlu0 %930
  %932 = vadd.xlane.f32.xlu0 %v864
  %v933 = vpop.xlane.xlu0 %932
  %934 = vadd.xlane.f32.xlu0 %v865
  %v935 = vpop.xlane.xlu0 %934
  %936 = vadd.xlane.f32.xlu0 %v866
  %v937 = vpop.xlane.xlu0 %936
  %938 = vadd.xlane.f32.xlu0 %v867
  %v939 = vpop.xlane.xlu0 %938
  %940 = vadd.xlane.f32.xlu0 %v868
  %v941 = vpop.xlane.xlu0 %940
  %942 = vadd.xlane.f32.xlu0 %v869
  %v943 = vpop.xlane.xlu0 %942
  %944 = vadd.xlane.f32.xlu0 %v870
  %v945 = vpop.xlane.xlu0 %944
  %946 = vadd.xlane.f32.xlu0 %v871
  %v947 = vpop.xlane.xlu0 %946
  %948 = vadd.xlane.f32.xlu0 %v872
  %v949 = vpop.xlane.xlu0 %948
  %950 = vadd.xlane.f32.xlu0 %v873
  %v951 = vpop.xlane.xlu0 %950
  %952 = vadd.xlane.f32.xlu0 %v874
  %v953 = vpop.xlane.xlu0 %952
  %954 = vadd.xlane.f32.xlu0 %v875
  %v955 = vpop.xlane.xlu0 %954
  %956 = vadd.xlane.f32.xlu0 %v876
  %v957 = vpop.xlane.xlu0 %956
  %958 = vadd.xlane.f32.xlu0 %v877
  %v959 = vpop.xlane.xlu0 %958
  %960 = vadd.xlane.f32.xlu0 %v878
  %v961 = vpop.xlane.xlu0 %960
  %962 = vadd.xlane.f32.xlu0 %v879
  %v963 = vpop.xlane.xlu0 %962
  %964 = vadd.xlane.f32.xlu0 %v880
  %v965 = vpop.xlane.xlu0 %964
  %966 = vadd.xlane.f32.xlu0 %v881
  %v967 = vpop.xlane.xlu0 %966
  %968 = vadd.xlane.f32.xlu0 %v882
  %v969 = vpop.xlane.xlu0 %968
  %970 = vadd.xlane.f32.xlu0 %v883
  %v971 = vpop.xlane.xlu0 %970
  %972 = vadd.xlane.f32.xlu0 %v884
  %v973 = vpop.xlane.xlu0 %972
  %974 = vadd.xlane.f32.xlu0 %v885
  %v975 = vpop.xlane.xlu0 %974
  %976 = vadd.xlane.f32.xlu0 %v886
  %v977 = vpop.xlane.xlu0 %976
  %978 = vadd.xlane.f32.xlu0 %v887
  %v979 = vpop.xlane.xlu0 %978
  %980 = vadd.xlane.f32.xlu0 %v888
  %v981 = vpop.xlane.xlu0 %980
  %982 = vadd.xlane.f32.xlu0 %v889
  %v983 = vpop.xlane.xlu0 %982
  %984 = vadd.xlane.f32.xlu0 %v890
  %v985 = vpop.xlane.xlu0 %984
  %986 = vadd.xlane.f32.xlu0 %v891
  %v987 = vpop.xlane.xlu0 %986
  %988 = vadd.xlane.f32.xlu0 %v892
  %v989 = vpop.xlane.xlu0 %988
  %990 = vadd.xlane.f32.xlu0 %v893
  %v991 = vpop.xlane.xlu0 %990
  %992 = vadd.xlane.f32.xlu0 %v894
  %v993 = vpop.xlane.xlu0 %992
  %994 = vadd.xlane.f32.xlu0 %v895
  %v995 = vpop.xlane.xlu0 %994
  %996 = vadd.xlane.f32.xlu0 %v896
  %v997 = vpop.xlane.xlu0 %996
  %998 = vadd.xlane.f32.xlu0 %v897
  %v999 = vpop.xlane.xlu0 %998
  %1000 = vadd.xlane.f32.xlu0 %v898
  %v1001 = vpop.xlane.xlu0 %1000
  %1002 = vadd.xlane.f32.xlu0 %v899
  %v1003 = vpop.xlane.xlu0 %1002
  %1004 = vadd.xlane.f32.xlu0 %v900
  %v1005 = vpop.xlane.xlu0 %1004
  %1006 = vadd.xlane.f32.xlu0 %v901
  %v1007 = vpop.xlane.xlu0 %1006
  %1008 = vadd.xlane.f32.xlu0 %v902
  %v1009 = vpop.xlane.xlu0 %1008
  %1010 = vadd.xlane.f32.xlu0 %v903
  %v1011 = vpop.xlane.xlu0 %1010
  %1012 = vadd.xlane.f32.xlu0 %v904
  %v1013 = vpop.xlane.xlu0 %1012
  %1014 = vadd.xlane.f32.xlu0 %v905
  %v1015 = vpop.xlane.xlu0 %1014
  %1016 = vadd.xlane.f32.xlu0 %v906
  %v1017 = vpop.xlane.xlu0 %1016
  %1018 = vadd.xlane.f32.xlu0 %v907
  %v1019 = vpop.xlane.xlu0 %1018
  %1020 = vadd.xlane.f32.xlu0 %v908
  %v1021 = vpop.xlane.xlu0 %1020
  %1022 = vadd.xlane.f32.xlu0 %v909
  %v1023 = vpop.xlane.xlu0 %1022
  %1024 = vadd.xlane.f32.xlu0 %v910
  %v1025 = vpop.xlane.xlu0 %1024
  %1026 = vadd.xlane.f32.xlu0 %v911
  %v1027 = vpop.xlane.xlu0 %1026
  %1028 = vadd.xlane.f32.xlu0 %v912
  %v1029 = vpop.xlane.xlu0 %1028
  %1030 = vadd.xlane.f32.xlu0 %v913
  %v1031 = vpop.xlane.xlu0 %1030
  %1032 = vadd.xlane.f32.xlu0 %v914
  %v1033 = vpop.xlane.xlu0 %1032
  %1034 = vadd.xlane.f32.xlu0 %v915
  %v1035 = vpop.xlane.xlu0 %1034
  %1036 = vadd.xlane.f32.xlu0 %v916
  %v1037 = vpop.xlane.xlu0 %1036
  %1038 = vadd.xlane.f32.xlu0 %v917
  %v1039 = vpop.xlane.xlu0 %1038
  %1040 = vadd.xlane.f32.xlu0 %v918
  %v1041 = vpop.xlane.xlu0 %1040
  %1042 = vadd.xlane.f32.xlu0 %v919
  %v1043 = vpop.xlane.xlu0 %1042
  %1044 = vadd.xlane.f32.xlu0 %v920
  %v1045 = vpop.xlane.xlu0 %1044
  %1046 = vadd.xlane.f32.xlu0 %v921
  %v1047 = vpop.xlane.xlu0 %1046
  %1048 = vadd.xlane.f32.xlu0 %v922
  %v1049 = vpop.xlane.xlu0 %1048
  %1050 = vadd.xlane.f32.xlu0 %v923
  %v1051 = vpop.xlane.xlu0 %1050
  %s1052 = sld [smem:[#allocation2]]
  %v1053 = vstv %s1052
  %v1054 = vadd.f32 %v925, %v1053
  %v1055 = vadd.f32 %v927, %v1053
  %v1056 = vadd.f32 %v929, %v1053
  %v1057 = vadd.f32 %v931, %v1053
  %v1058 = vadd.f32 %v933, %v1053
  %v1059 = vadd.f32 %v935, %v1053
  %v1060 = vadd.f32 %v937, %v1053
  %v1061 = vadd.f32 %v939, %v1053
  %v1062 = vadd.f32 %v941, %v1053
  %v1063 = vadd.f32 %v943, %v1053
  %v1064 = vadd.f32 %v945, %v1053
  %v1065 = vadd.f32 %v947, %v1053
  %v1066 = vadd.f32 %v949, %v1053
  %v1067 = vadd.f32 %v951, %v1053
  %v1068 = vadd.f32 %v953, %v1053
  %v1069 = vadd.f32 %v955, %v1053
  %v1070 = vadd.f32 %v957, %v1053
  %v1071 = vadd.f32 %v959, %v1053
  %v1072 = vadd.f32 %v961, %v1053
  %v1073 = vadd.f32 %v963, %v1053
  %v1074 = vadd.f32 %v965, %v1053
  %v1075 = vadd.f32 %v967, %v1053
  %v1076 = vadd.f32 %v969, %v1053
  %v1077 = vadd.f32 %v971, %v1053
  %v1078 = vadd.f32 %v973, %v1053
  %v1079 = vadd.f32 %v975, %v1053
  %v1080 = vadd.f32 %v977, %v1053
  %v1081 = vadd.f32 %v979, %v1053
  %v1082 = vadd.f32 %v981, %v1053
  %v1083 = vadd.f32 %v983, %v1053
  %v1084 = vadd.f32 %v985, %v1053
  %v1085 = vadd.f32 %v987, %v1053
  %v1086 = vadd.f32 %v989, %v1053
  %v1087 = vadd.f32 %v991, %v1053
  %v1088 = vadd.f32 %v993, %v1053
  %v1089 = vadd.f32 %v995, %v1053
  %v1090 = vadd.f32 %v997, %v1053
  %v1091 = vadd.f32 %v999, %v1053
  %v1092 = vadd.f32 %v1001, %v1053
  %v1093 = vadd.f32 %v1003, %v1053
  %v1094 = vadd.f32 %v1005, %v1053
  %v1095 = vadd.f32 %v1007, %v1053
  %v1096 = vadd.f32 %v1009, %v1053
  %v1097 = vadd.f32 %v1011, %v1053
  %v1098 = vadd.f32 %v1013, %v1053
  %v1099 = vadd.f32 %v1015, %v1053
  %v1100 = vadd.f32 %v1017, %v1053
  %v1101 = vadd.f32 %v1019, %v1053
  %v1102 = vadd.f32 %v1021, %v1053
  %v1103 = vadd.f32 %v1023, %v1053
  %v1104 = vadd.f32 %v1025, %v1053
  %v1105 = vadd.f32 %v1027, %v1053
  %v1106 = vadd.f32 %v1029, %v1053
  %v1107 = vadd.f32 %v1031, %v1053
  %v1108 = vadd.f32 %v1033, %v1053
  %v1109 = vadd.f32 %v1035, %v1053
  %v1110 = vadd.f32 %v1037, %v1053
  %v1111 = vadd.f32 %v1039, %v1053
  %v1112 = vadd.f32 %v1041, %v1053
  %v1113 = vadd.f32 %v1043, %v1053
  %v1114 = vadd.f32 %v1045, %v1053
  %v1115 = vadd.f32 %v1047, %v1053
  %v1116 = vadd.f32 %v1049, %v1053
  %v1117 = vadd.f32 %v1051, %v1053
  %v1118 = vtanh.pop %v1054
  %v1119 = vtanh.pop %v1055
  %v1120 = vtanh.pop %v1056
  %v1121 = vtanh.pop %v1057
  %v1122 = vtanh.pop %v1058
  %v1123 = vtanh.pop %v1059
  %v1124 = vtanh.pop %v1060
  %v1125 = vtanh.pop %v1061
  %v1126 = vtanh.pop %v1062
  %v1127 = vtanh.pop %v1063
  %v1128 = vtanh.pop %v1064
  %v1129 = vtanh.pop %v1065
  %v1130 = vtanh.pop %v1066
  %v1131 = vtanh.pop %v1067
  %v1132 = vtanh.pop %v1068
  %v1133 = vtanh.pop %v1069
  %v1134 = vtanh.pop %v1070
  %v1135 = vtanh.pop %v1071
  %v1136 = vtanh.pop %v1072
  %v1137 = vtanh.pop %v1073
  %v1138 = vtanh.pop %v1074
  %v1139 = vtanh.pop %v1075
  %v1140 = vtanh.pop %v1076
  %v1141 = vtanh.pop %v1077
  %v1142 = vtanh.pop %v1078
  %v1143 = vtanh.pop %v1079
  %v1144 = vtanh.pop %v1080
  %v1145 = vtanh.pop %v1081
  %v1146 = vtanh.pop %v1082
  %v1147 = vtanh.pop %v1083
  %v1148 = vtanh.pop %v1084
  %v1149 = vtanh.pop %v1085
  %v1150 = vtanh.pop %v1086
  %v1151 = vtanh.pop %v1087
  %v1152 = vtanh.pop %v1088
  %v1153 = vtanh.pop %v1089
  %v1154 = vtanh.pop %v1090
  %v1155 = vtanh.pop %v1091
  %v1156 = vtanh.pop %v1092
  %v1157 = vtanh.pop %v1093
  %v1158 = vtanh.pop %v1094
  %v1159 = vtanh.pop %v1095
  %v1160 = vtanh.pop %v1096
  %v1161 = vtanh.pop %v1097
  %v1162 = vtanh.pop %v1098
  %v1163 = vtanh.pop %v1099
  %v1164 = vtanh.pop %v1100
  %v1165 = vtanh.pop %v1101
  %v1166 = vtanh.pop %v1102
  %v1167 = vtanh.pop %v1103
  %v1168 = vtanh.pop %v1104
  %v1169 = vtanh.pop %v1105
  %v1170 = vtanh.pop %v1106
  %v1171 = vtanh.pop %v1107
  %v1172 = vtanh.pop %v1108
  %v1173 = vtanh.pop %v1109
  %v1174 = vtanh.pop %v1110
  %v1175 = vtanh.pop %v1111
  %v1176 = vtanh.pop %v1112
  %v1177 = vtanh.pop %v1113
  %v1178 = vtanh.pop %v1114
  %v1179 = vtanh.pop %v1115
  %v1180 = vtanh.pop %v1116
  %v1181 = vtanh.pop %v1117
  %vm1182 = vcmask 7168
  %1183 = vst.msk [vmem:[%s7] sm:$0xff] %vm1182, %v1118
  %1184 = vst.msk [vmem:[%s7 + $0x8] sm:$0xff] %vm1182, %v1119
  %1185 = vst.msk [vmem:[%s7 + $0x10] sm:$0xff] %vm1182, %v1120
  %1186 = vst.msk [vmem:[%s7 + $0x18] sm:$0xff] %vm1182, %v1121
  %1187 = vst.msk [vmem:[%s7 + $0x20] sm:$0xff] %vm1182, %v1122
  %1188 = vst.msk [vmem:[%s7 + $0x28] sm:$0xff] %vm1182, %v1123
  %1189 = vst.msk [vmem:[%s7 + $0x30] sm:$0xff] %vm1182, %v1124
  %1190 = vst.msk [vmem:[%s7 + $0x38] sm:$0xff] %vm1182, %v1125
  %1191 = vst.msk [vmem:[%s7 + $0x40] sm:$0xff] %vm1182, %v1126
  %1192 = vst.msk [vmem:[%s7 + $0x48] sm:$0xff] %vm1182, %v1127
  %1193 = vst.msk [vmem:[%s7 + $0x50] sm:$0xff] %vm1182, %v1128
  %1194 = vst.msk [vmem:[%s7 + $0x58] sm:$0xff] %vm1182, %v1129
  %1195 = vst.msk [vmem:[%s7 + $0x60] sm:$0xff] %vm1182, %v1130
  %1196 = vst.msk [vmem:[%s7 + $0x68] sm:$0xff] %vm1182, %v1131
  %1197 = vst.msk [vmem:[%s7 + $0x70] sm:$0xff] %vm1182, %v1132
  %1198 = vst.msk [vmem:[%s7 + $0x78] sm:$0xff] %vm1182, %v1133
  %1199 = vst.msk [vmem:[%s7 + $0x80] sm:$0xff] %vm1182, %v1134
  %1200 = vst.msk [vmem:[%s7 + $0x88] sm:$0xff] %vm1182, %v1135
  %1201 = vst.msk [vmem:[%s7 + $0x90] sm:$0xff] %vm1182, %v1136
  %1202 = vst.msk [vmem:[%s7 + $0x98] sm:$0xff] %vm1182, %v1137
  %1203 = vst.msk [vmem:[%s7 + $0xa0] sm:$0xff] %vm1182, %v1138
  %1204 = vst.msk [vmem:[%s7 + $0xa8] sm:$0xff] %vm1182, %v1139
  %1205 = vst.msk [vmem:[%s7 + $0xb0] sm:$0xff] %vm1182, %v1140
  %1206 = vst.msk [vmem:[%s7 + $0xb8] sm:$0xff] %vm1182, %v1141
  %1207 = vst.msk [vmem:[%s7 + $0xc0] sm:$0xff] %vm1182, %v1142
  %1208 = vst.msk [vmem:[%s7 + $0xc8] sm:$0xff] %vm1182, %v1143
  %1209 = vst.msk [vmem:[%s7 + $0xd0] sm:$0xff] %vm1182, %v1144
  %1210 = vst.msk [vmem:[%s7 + $0xd8] sm:$0xff] %vm1182, %v1145
  %1211 = vst.msk [vmem:[%s7 + $0xe0] sm:$0xff] %vm1182, %v1146
  %1212 = vst.msk [vmem:[%s7 + $0xe8] sm:$0xff] %vm1182, %v1147
  %1213 = vst.msk [vmem:[%s7 + $0xf0] sm:$0xff] %vm1182, %v1148
  %1214 = vst.msk [vmem:[%s7 + $0xf8] sm:$0xff] %vm1182, %v1149
  %1215 = vst.msk [vmem:[%s7 + $0x100] sm:$0xff] %vm1182, %v1150
  %1216 = vst.msk [vmem:[%s7 + $0x108] sm:$0xff] %vm1182, %v1151
  %1217 = vst.msk [vmem:[%s7 + $0x110] sm:$0xff] %vm1182, %v1152
  %1218 = vst.msk [vmem:[%s7 + $0x118] sm:$0xff] %vm1182, %v1153
  %1219 = vst.msk [vmem:[%s7 + $0x120] sm:$0xff] %vm1182, %v1154
  %1220 = vst.msk [vmem:[%s7 + $0x128] sm:$0xff] %vm1182, %v1155
  %1221 = vst.msk [vmem:[%s7 + $0x130] sm:$0xff] %vm1182, %v1156
  %1222 = vst.msk [vmem:[%s7 + $0x138] sm:$0xff] %vm1182, %v1157
  %1223 = vst.msk [vmem:[%s7 + $0x140] sm:$0xff] %vm1182, %v1158
  %1224 = vst.msk [vmem:[%s7 + $0x148] sm:$0xff] %vm1182, %v1159
  %1225 = vst.msk [vmem:[%s7 + $0x150] sm:$0xff] %vm1182, %v1160
  %1226 = vst.msk [vmem:[%s7 + $0x158] sm:$0xff] %vm1182, %v1161
  %1227 = vst.msk [vmem:[%s7 + $0x160] sm:$0xff] %vm1182, %v1162
  %1228 = vst.msk [vmem:[%s7 + $0x168] sm:$0xff] %vm1182, %v1163
  %1229 = vst.msk [vmem:[%s7 + $0x170] sm:$0xff] %vm1182, %v1164
  %1230 = vst.msk [vmem:[%s7 + $0x178] sm:$0xff] %vm1182, %v1165
  %1231 = vst.msk [vmem:[%s7 + $0x180] sm:$0xff] %vm1182, %v1166
  %1232 = vst.msk [vmem:[%s7 + $0x188] sm:$0xff] %vm1182, %v1167
  %1233 = vst.msk [vmem:[%s7 + $0x190] sm:$0xff] %vm1182, %v1168
  %1234 = vst.msk [vmem:[%s7 + $0x198] sm:$0xff] %vm1182, %v1169
  %1235 = vst.msk [vmem:[%s7 + $0x1a0] sm:$0xff] %vm1182, %v1170
  %1236 = vst.msk [vmem:[%s7 + $0x1a8] sm:$0xff] %vm1182, %v1171
  %1237 = vst.msk [vmem:[%s7 + $0x1b0] sm:$0xff] %vm1182, %v1172
  %1238 = vst.msk [vmem:[%s7 + $0x1b8] sm:$0xff] %vm1182, %v1173
  %1239 = vst.msk [vmem:[%s7 + $0x1c0] sm:$0xff] %vm1182, %v1174
  %1240 = vst.msk [vmem:[%s7 + $0x1c8] sm:$0xff] %vm1182, %v1175
  %1241 = vst.msk [vmem:[%s7 + $0x1d0] sm:$0xff] %vm1182, %v1176
  %1242 = vst.msk [vmem:[%s7 + $0x1d8] sm:$0xff] %vm1182, %v1177
  %1243 = vst.msk [vmem:[%s7 + $0x1e0] sm:$0xff] %vm1182, %v1178
  %1244 = vst.msk [vmem:[%s7 + $0x1e8] sm:$0xff] %vm1182, %v1179
  %1245 = vst.msk [vmem:[%s7 + $0x1f0] sm:$0xff] %vm1182, %v1180
  %1246 = vst.msk [vmem:[%s7 + $0x1f8] sm:$0xff] %vm1182, %v1181
  // Predicated region
  $region30: #{critic_forward.1} parent=0 // pred_check
    _
  $region31: #{critic_forward.1} parent=0 // pred_check_branch
    %1248 = sbr.rel (0) target = $region33
  $region32: #{critic_forward.1} parent=0 // pred_region
    _
  $region33: #{critic_forward.1} parent=0 // pred_fallthru
    _
  // Predicated region
  $region34: #{critic_forward.1} parent=0 // pred_check
    _
  $region35: #{critic_forward.1} parent=0 // pred_check_branch
    %1250 = sbr.rel (0) target = $region37
  $region36: #{critic_forward.1} parent=0 // pred_region
    _
  $region37: #{critic_forward.1} parent=0 // pred_fallthru
    _

</llo_original>
